<compile_context>
chip_gen: v5e
topology: v5e:2x2
jax: 0.10.0
libtpu: 0.0.40
codegen_flags: <defaults>
</compile_context>

<pallas_src>
import jax
import jax.numpy as jnp
from jax.experimental import pallas as pl
from jax.experimental.pallas import tpu as pltpu

LANE = 128


def _round_up(x, m):
    return ((x + m - 1) // m) * m


# ---------------------------------------------------------------------------
# Kernels
# ---------------------------------------------------------------------------
def _critic_dn_kernel(x_ref,
                      w0_ref, b0_ref,                     # net__mid[0]
                      wd1_ref, bd1_ref,                   # DenseNet.dense1
                      wd2a_ref, wd2b_ref, bd2_ref,        # DenseNet.dense2 (row-split)
                      wqa_ref, wqb_ref, wqc_ref, bq_ref,  # [q1|q2] heads (row-split)
                      out_ref):
    x = x_ref[...]                                               # bf16 (tile, in_p)

    h0 = jnp.dot(x, w0_ref[...], preferred_element_type=jnp.float32) + b0_ref[...]
    h0 = jnp.maximum(h0, 0.0)                                    # ReLU
    x0 = h0.astype(jnp.bfloat16)

    h1 = jnp.dot(x0, wd1_ref[...], preferred_element_type=jnp.float32) + bd1_ref[...]
    h1 = jnp.maximum(h1, 0.0)                                    # ReLU (dense1)
    d1 = h1.astype(jnp.bfloat16)

    # dense2 over cat(x0, d1): split matmul avoids an in-kernel lane concat.
    y2 = (jnp.dot(x0, wd2a_ref[...], preferred_element_type=jnp.float32)
          + jnp.dot(d1, wd2b_ref[...], preferred_element_type=jnp.float32)
          + bd2_ref[...])
    # HardSwish: relu6(y + 3) / 6 * y
    h2 = jnp.clip(y2 + 3.0, 0.0, 6.0) * (1.0 / 6.0) * y2
    d2 = h2.astype(jnp.bfloat16)

    # q heads over cat(x0, d1, d2): split matmul; q1 = lane 0, q2 = lane 1.
    q = (jnp.dot(x0, wqa_ref[...], preferred_element_type=jnp.float32)
         + jnp.dot(d1, wqb_ref[...], preferred_element_type=jnp.float32)
         + jnp.dot(d2, wqc_ref[...], preferred_element_type=jnp.float32)
         + bq_ref[...])
    out_ref[...] = q


def _critic_plain_kernel(x_ref,
                         w0_ref, b0_ref,       # net__mid[0]
                         w1_ref, b1_ref,       # net__mid[2]
                         wq_ref, bq_ref,       # [q1|q2] heads
                         out_ref):
    x = x_ref[...]
    h0 = jnp.dot(x, w0_ref[...], preferred_element_type=jnp.float32) + b0_ref[...]
    h0 = jnp.maximum(h0, 0.0)
    x0 = h0.astype(jnp.bfloat16)
    h1 = jnp.dot(x0, w1_ref[...], preferred_element_type=jnp.float32) + b1_ref[...]
    x1 = h1.astype(jnp.bfloat16)
    q = jnp.dot(x1, wq_ref[...], preferred_element_type=jnp.float32) + bq_ref[...]
    out_ref[...] = q


# ---------------------------------------------------------------------------
# Wrapper
# ---------------------------------------------------------------------------
def critic_twin_q1_q2(state, action, kp, *, batch_tile=256):
    """Returns (q1, q2), each (B, 1) float32."""
    x = jnp.concatenate([state, action], axis=1).astype(jnp.bfloat16)
    B, in_dim = x.shape
    assert in_dim == kp["in_dim"]
    in_p = kp["in_p"]

    batch_tile = _round_up(max(batch_tile, 8), 8)
    tile = min(batch_tile, _round_up(max(B, 1), 8))
    Bp = _round_up(max(B, 1), tile)

    xp = jnp.zeros((Bp, in_p), jnp.bfloat16).at[:B, :in_dim].set(x)

    tensors = kp["tensors"]
    kernel = _critic_dn_kernel if kp["use_dn"] else _critic_plain_kernel

    def inv_spec(t):
        nd = t.ndim
        return pl.BlockSpec(t.shape, lambda i, nd=nd: (0,) * nd)

    w_bytes = sum(int(t.size) * t.dtype.itemsize for t in tensors)
    flops = 2 * Bp * sum(t.shape[0] * t.shape[1] for t in tensors if t.shape[0] > 1)
    cost = pl.CostEstimate(
        flops=int(flops),
        transcendentals=0,
        bytes_accessed=int(xp.size * 2 + w_bytes + Bp * LANE * 4),
    )

    out = pl.pallas_call(
        kernel,
        out_shape=jax.ShapeDtypeStruct((Bp, LANE), jnp.float32),
        grid_spec=pltpu.PrefetchScalarGridSpec(
            num_scalar_prefetch=0,
            grid=(Bp // tile,),
            in_specs=[pl.BlockSpec((tile, in_p), lambda i: (i, 0))]
                     + [inv_spec(t) for t in tensors],
            out_specs=pl.BlockSpec((tile, LANE), lambda i: (i, 0)),
        ),
        compiler_params=pltpu.CompilerParams(
            dimension_semantics=("parallel",)),
        cost_estimate=cost,
    )(xp, *tensors)

    return out[:B, 0:1], out[:B, 1:2]


def critic_twin_forward(state, action, kp, *, batch_tile=256):
    """CriticTwinShared.forward: q1 only."""
    q1, _ = critic_twin_q1_q2(state, action, kp, batch_tile=batch_tile)
    return q1


# ---------------------------------------------------------------------------
# Parameter construction (mirrors PyTorch init schemes / shapes)
# ---------------------------------------------------------------------------
def _default_linear(key, fan_in, fan_out):
    """nn.Linear default: U(-1/sqrt(fan_in), 1/sqrt(fan_in)). W is (in, out)."""
    kw, kb = jax.random.split(key)
    bound = 1.0 / (fan_in ** 0.5)
    w = jax.random.uniform(kw, (fan_in, fan_out), jnp.float32, -bound, bound)
    b = jax.random.uniform(kb, (fan_out,), jnp.float32, -bound, bound)
    return w, b


def _orthogonal_linear(key, fan_in, fan_out, std, bias_const=1e-6):
    """_layer_norm: orthogonal weight * std, constant bias. W is (in, out)."""
    a = jax.random.normal(key, (max(fan_in, fan_out), min(fan_in, fan_out)),
                          jnp.float32)
    q, _ = jnp.linalg.qr(a)
    w = q[:fan_in, :fan_out] if fan_in >= fan_out else q[:fan_out, :fan_in].T
    return std * w.astype(jnp.float32), jnp.full((fan_out,), bias_const, jnp.float32)


def make_params(state_dim, action_dim, mid_dim, use_dn, seed=0):
    in_dim = state_dim + action_dim
    key = jax.random.PRNGKey(seed)
    if use_dn:
        assert mid_dim % 8 == 0            # DenseNet assert
        k0, k1, k2, k3, k4 = jax.random.split(key, 5)
        m = mid_dim
        h1 = m // 2                        # dense1 out
        m2 = int(1.5 * m)                  # id2dim(1)
        h2 = m2 // 2                       # dense2 out
        lay = int(2.25 * m)                # id2dim(2) == m + h1 + h2
        w0, b0 = _default_linear(k0, in_dim, m)                 # net__mid[0]
        wd1, bd1 = _orthogonal_linear(k1, m, h1, std=1.0)       # dense1
        wd2, bd2 = _orthogonal_linear(k2, m2, h2, std=1.0)      # dense2
        wq1, bq1 = _orthogonal_linear(k3, lay, 1, std=0.1)      # net__q1
        wq2, bq2 = _orthogonal_linear(k4, lay, 1, std=0.1)      # net__q2
        return dict(use_dn=True, dims=(in_dim, m, h1, h2, lay),
                    w0=w0, b0=b0, wd1=wd1, bd1=bd1, wd2=wd2, bd2=bd2,
                    wq1=wq1, bq1=bq1, wq2=wq2, bq2=bq2)
    else:
        k0, k1, k2, k3 = jax.random.split(key, 4)
        w0, b0 = _default_linear(k0, in_dim, mid_dim)           # net__mid[0]
        w1, b1 = _default_linear(k1, mid_dim, mid_dim)          # net__mid[2]
        wq1, bq1 = _orthogonal_linear(k2, mid_dim, 1, std=0.1)  # net__q1
        wq2, bq2 = _orthogonal_linear(k3, mid_dim, 1, std=0.1)  # net__q2
        return dict(use_dn=False, dims=(in_dim, mid_dim),
                    w0=w0, b0=b0, w1=w1, b1=b1,
                    wq1=wq1, bq1=bq1, wq2=wq2, bq2=bq2)


def _pad_w(w, rp, cp):
    r, c = w.shape
    return jnp.zeros((rp, cp), jnp.bfloat16).at[:r, :c].set(w.astype(jnp.bfloat16))


def _pad_b(b, cp):
    return jnp.zeros((1, cp), jnp.float32).at[0, :b.shape[0]].set(b.astype(jnp.float32))


def prepare_kernel_params(p):
    """Pad to lane-aligned (128) shapes, cast weights to bf16, split the
    concat-fed weight matrices by rows, and fuse the two q heads into the
    first two lanes of a 128-wide output head."""
    if p["use_dn"]:
        in_dim, m, h1, h2, _ = p["dims"]
        in_p, m_p, h1_p, h2_p = (_round_up(d, LANE) for d in (in_dim, m, h1, h2))
        wq = jnp.concatenate([p["wq1"], p["wq2"]], axis=1)       # (lay, 2)
        bq = jnp.concatenate([p["bq1"], p["bq2"]], axis=0)       # (2,)
        wd2 = p["wd2"]
        tensors = (
            _pad_w(p["w0"], in_p, m_p), _pad_b(p["b0"], m_p),
            _pad_w(p["wd1"], m_p, h1_p), _pad_b(p["bd1"], h1_p),
            _pad_w(wd2[:m], m_p, h2_p), _pad_w(wd2[m:], h1_p, h2_p),
            _pad_b(p["bd2"], h2_p),
            _pad_w(wq[:m], m_p, LANE), _pad_w(wq[m:m + h1], h1_p, LANE),
            _pad_w(wq[m + h1:], h2_p, LANE), _pad_b(bq, LANE),
        )
        return dict(use_dn=True, in_dim=in_dim, in_p=in_p, tensors=tensors)
    else:
        in_dim, m = p["dims"]
        in_p, m_p = _round_up(in_dim, LANE), _round_up(m, LANE)
        wq = jnp.concatenate([p["wq1"], p["wq2"]], axis=1)
        bq = jnp.concatenate([p["bq1"], p["bq2"]], axis=0)
        tensors = (
            _pad_w(p["w0"], in_p, m_p), _pad_b(p["b0"], m_p),
            _pad_w(p["w1"], m_p, m_p), _pad_b(p["b1"], m_p),
            _pad_w(wq, m_p, LANE), _pad_b(bq, LANE),
        )
        return dict(use_dn=False, in_dim=in_dim, in_p=in_p, tensors=tensors)


# ---------------------------------------------------------------------------
# Pure-JAX reference (module structure with concats; emulates the kernel's
# bf16-weight / bf16-activation / f32-accumulate matmul precision).
# ---------------------------------------------------------------------------
def reference_q1_q2(state, action, p):
    def mm(a, w):
        return jnp.dot(a.astype(jnp.bfloat16), w.astype(jnp.bfloat16),
                       preferred_element_type=jnp.float32)

    x = jnp.concatenate([state, action], axis=1)
    if p["use_dn"]:
        x0 = jnp.maximum(mm(x, p["w0"]) + p["b0"], 0.0)
        d1 = jnp.maximum(mm(x0, p["wd1"]) + p["bd1"], 0.0)
        x2 = jnp.concatenate([x0, d1], axis=1)
        y2 = mm(x2, p["wd2"]) + p["bd2"]
        d2 = jnp.clip(y2 + 3.0, 0.0, 6.0) * (1.0 / 6.0) * y2    # HardSwish
        x3 = jnp.concatenate([x2, d2], axis=1)
    else:
        h = jnp.maximum(mm(x, p["w0"]) + p["b0"], 0.0)
        x3 = mm(h, p["w1"]) + p["b1"]
    q1 = mm(x3, p["wq1"]) + p["bq1"]
    q2 = mm(x3, p["wq2"]) + p["bq2"]
    return q1, q2


if __name__ == "__main__":
    state_dim, action_dim, mid_dim = 16, 4, 32
    batch = 10                                     # ragged on purpose (padded to 16)

    key = jax.random.PRNGKey(0)
    ks, ka = jax.random.split(key)
    state = jax.random.normal(ks, (batch, state_dim), jnp.float32)
    action = jax.random.normal(ka, (batch, action_dim), jnp.float32)

    for use_dn in (True, False):
        params = make_params(state_dim, action_dim, mid_dim, use_dn, seed=1)
        kp = prepare_kernel_params(params)

        q1 = critic_twin_forward(state, action, kp)            # forward()
        q1b, q2b = critic_twin_q1_q2(state, action, kp)        # get__q1_q2()
        # multi-tile grid path (tile=8 -> 2 grid steps for batch=10)
        q1c, q2c = critic_twin_q1_q2(state, action, kp, batch_tile=8)
        q1 = jax.block_until_ready(q1)
        q1b = jax.block_until_ready(q1b)
        q2b = jax.block_until_ready(q2b)
        q1c = jax.block_until_ready(q1c)
        q2c = jax.block_until_ready(q2c)

        r1, r2 = reference_q1_q2(state, action, params)
        assert q1.shape == (batch, 1) and q2b.shape == (batch, 1)
        errs = [float(jnp.max(jnp.abs(a - b)))
                for a, b in ((q1, r1), (q1b, r1), (q2b, r2), (q1c, r1), (q2c, r2))]
        assert max(errs) < 2e-3, f"use_dn={use_dn} mismatch: {errs}"

    print("KERNEL_OK")
</pallas_src>

<mosaic_0001>
module attributes {stable_mosaic.version = 11 : i64} {
  func.func @_critic_dn_kernel(%arg0: i32, %arg1: memref<16x128xbf16, #tpu.memory_space<vmem>>, %arg2: memref<128x128xbf16, #tpu.memory_space<vmem>>, %arg3: memref<1x128xf32, #tpu.memory_space<vmem>>, %arg4: memref<128x128xbf16, #tpu.memory_space<vmem>>, %arg5: memref<1x128xf32, #tpu.memory_space<vmem>>, %arg6: memref<128x128xbf16, #tpu.memory_space<vmem>>, %arg7: memref<128x128xbf16, #tpu.memory_space<vmem>>, %arg8: memref<1x128xf32, #tpu.memory_space<vmem>>, %arg9: memref<128x128xbf16, #tpu.memory_space<vmem>>, %arg10: memref<128x128xbf16, #tpu.memory_space<vmem>>, %arg11: memref<128x128xbf16, #tpu.memory_space<vmem>>, %arg12: memref<1x128xf32, #tpu.memory_space<vmem>>, %arg13: memref<16x128xf32, #tpu.memory_space<vmem>>) attributes {dimension_semantics = [#tpu.dimension_semantics<parallel>], iteration_bounds = array<i64: 1>, scalar_prefetch = 0 : i64, scratch_operands = 0 : i64, tpu.core_type = #tpu.core_type<tc>, window_params = [{transform_indices = @transform_0, window_bounds = array<i64: 16, 128>}, {pipeline_mode = #tpu.pipeline_mode<synchronous>, transform_indices = @transform_1, window_bounds = array<i64: 128, 128>}, {pipeline_mode = #tpu.pipeline_mode<synchronous>, transform_indices = @transform_2, window_bounds = array<i64: 1, 128>}, {pipeline_mode = #tpu.pipeline_mode<synchronous>, transform_indices = @transform_3, window_bounds = array<i64: 128, 128>}, {pipeline_mode = #tpu.pipeline_mode<synchronous>, transform_indices = @transform_4, window_bounds = array<i64: 1, 128>}, {pipeline_mode = #tpu.pipeline_mode<synchronous>, transform_indices = @transform_5, window_bounds = array<i64: 128, 128>}, {pipeline_mode = #tpu.pipeline_mode<synchronous>, transform_indices = @transform_6, window_bounds = array<i64: 128, 128>}, {pipeline_mode = #tpu.pipeline_mode<synchronous>, transform_indices = @transform_7, window_bounds = array<i64: 1, 128>}, {pipeline_mode = #tpu.pipeline_mode<synchronous>, transform_indices = @transform_8, window_bounds = array<i64: 128, 128>}, {pipeline_mode = #tpu.pipeline_mode<synchronous>, transform_indices = @transform_9, window_bounds = array<i64: 128, 128>}, {pipeline_mode = #tpu.pipeline_mode<synchronous>, transform_indices = @transform_10, window_bounds = array<i64: 128, 128>}, {pipeline_mode = #tpu.pipeline_mode<synchronous>, transform_indices = @transform_11, window_bounds = array<i64: 1, 128>}, {transform_indices = @transform_12, window_bounds = array<i64: 16, 128>}]} {
    %c0 = arith.constant 0 : index
    %c0_0 = arith.constant 0 : index
    %0 = vector.load %arg1[%c0, %c0_0] : memref<16x128xbf16, #tpu.memory_space<vmem>>, vector<16x128xbf16>
    %c0_1 = arith.constant 0 : index
    %c0_2 = arith.constant 0 : index
    %1 = vector.load %arg2[%c0_1, %c0_2] : memref<128x128xbf16, #tpu.memory_space<vmem>>, vector<128x128xbf16>
    %cst = arith.constant dense<0.000000e+00> : vector<16x128xf32>
    %2 = tpu.matmul %0, %1, %cst {dimension_numbers = #tpu.dot_dimension_numbers<[1], [0], [0], [1], [0, 0, 1, 1], [], []>} : vector<16x128xbf16>, vector<128x128xbf16>, vector<16x128xf32> -> vector<16x128xf32>
    %c0_3 = arith.constant 0 : index
    %c0_4 = arith.constant 0 : index
    %3 = vector.load %arg3[%c0_3, %c0_4] : memref<1x128xf32, #tpu.memory_space<vmem>>, vector<1x128xf32>
    %4 = vector.broadcast %3 : vector<1x128xf32> to vector<16x128xf32>
    %5 = arith.addf %2, %4 : vector<16x128xf32>
    %cst_5 = arith.constant 0.000000e+00 : f32
    %6 = vector.broadcast %cst_5 : f32 to vector<16x128xf32>
    %7 = arith.maximumf %5, %6 : vector<16x128xf32>
    %8 = arith.truncf %7 : vector<16x128xf32> to vector<16x128xbf16>
    %c0_6 = arith.constant 0 : index
    %c0_7 = arith.constant 0 : index
    %9 = vector.load %arg4[%c0_6, %c0_7] : memref<128x128xbf16, #tpu.memory_space<vmem>>, vector<128x128xbf16>
    %cst_8 = arith.constant dense<0.000000e+00> : vector<16x128xf32>
    %10 = tpu.matmul %8, %9, %cst_8 {dimension_numbers = #tpu.dot_dimension_numbers<[1], [0], [0], [1], [0, 0, 1, 1], [], []>} : vector<16x128xbf16>, vector<128x128xbf16>, vector<16x128xf32> -> vector<16x128xf32>
    %c0_9 = arith.constant 0 : index
    %c0_10 = arith.constant 0 : index
    %11 = vector.load %arg5[%c0_9, %c0_10] : memref<1x128xf32, #tpu.memory_space<vmem>>, vector<1x128xf32>
    %12 = vector.broadcast %11 : vector<1x128xf32> to vector<16x128xf32>
    %13 = arith.addf %10, %12 : vector<16x128xf32>
    %cst_11 = arith.constant 0.000000e+00 : f32
    %14 = vector.broadcast %cst_11 : f32 to vector<16x128xf32>
    %15 = arith.maximumf %13, %14 : vector<16x128xf32>
    %16 = arith.truncf %15 : vector<16x128xf32> to vector<16x128xbf16>
    %c0_12 = arith.constant 0 : index
    %c0_13 = arith.constant 0 : index
    %17 = vector.load %arg6[%c0_12, %c0_13] : memref<128x128xbf16, #tpu.memory_space<vmem>>, vector<128x128xbf16>
    %cst_14 = arith.constant dense<0.000000e+00> : vector<16x128xf32>
    %18 = tpu.matmul %8, %17, %cst_14 {dimension_numbers = #tpu.dot_dimension_numbers<[1], [0], [0], [1], [0, 0, 1, 1], [], []>} : vector<16x128xbf16>, vector<128x128xbf16>, vector<16x128xf32> -> vector<16x128xf32>
    %c0_15 = arith.constant 0 : index
    %c0_16 = arith.constant 0 : index
    %19 = vector.load %arg7[%c0_15, %c0_16] : memref<128x128xbf16, #tpu.memory_space<vmem>>, vector<128x128xbf16>
    %cst_17 = arith.constant dense<0.000000e+00> : vector<16x128xf32>
    %20 = tpu.matmul %16, %19, %cst_17 {dimension_numbers = #tpu.dot_dimension_numbers<[1], [0], [0], [1], [0, 0, 1, 1], [], []>} : vector<16x128xbf16>, vector<128x128xbf16>, vector<16x128xf32> -> vector<16x128xf32>
    %21 = arith.addf %18, %20 : vector<16x128xf32>
    %c0_18 = arith.constant 0 : index
    %c0_19 = arith.constant 0 : index
    %22 = vector.load %arg8[%c0_18, %c0_19] : memref<1x128xf32, #tpu.memory_space<vmem>>, vector<1x128xf32>
    %23 = vector.broadcast %22 : vector<1x128xf32> to vector<16x128xf32>
    %24 = arith.addf %21, %23 : vector<16x128xf32>
    %cst_20 = arith.constant 3.000000e+00 : f32
    %25 = vector.broadcast %cst_20 : f32 to vector<16x128xf32>
    %26 = arith.addf %24, %25 : vector<16x128xf32>
    %cst_21 = arith.constant 0.000000e+00 : f32
    %cst_22 = arith.constant 6.000000e+00 : f32
    %27 = vector.broadcast %cst_21 : f32 to vector<16x128xf32>
    %28 = arith.maximumf %27, %26 : vector<16x128xf32>
    %29 = vector.broadcast %cst_22 : f32 to vector<16x128xf32>
    %30 = arith.minimumf %29, %28 : vector<16x128xf32>
    %cst_23 = arith.constant 0.166666672 : f32
    %31 = vector.broadcast %cst_23 : f32 to vector<16x128xf32>
    %32 = arith.mulf %30, %31 : vector<16x128xf32>
    %33 = arith.mulf %32, %24 : vector<16x128xf32>
    %34 = arith.truncf %33 : vector<16x128xf32> to vector<16x128xbf16>
    %c0_24 = arith.constant 0 : index
    %c0_25 = arith.constant 0 : index
    %35 = vector.load %arg9[%c0_24, %c0_25] : memref<128x128xbf16, #tpu.memory_space<vmem>>, vector<128x128xbf16>
    %cst_26 = arith.constant dense<0.000000e+00> : vector<16x128xf32>
    %36 = tpu.matmul %8, %35, %cst_26 {dimension_numbers = #tpu.dot_dimension_numbers<[1], [0], [0], [1], [0, 0, 1, 1], [], []>} : vector<16x128xbf16>, vector<128x128xbf16>, vector<16x128xf32> -> vector<16x128xf32>
    %c0_27 = arith.constant 0 : index
    %c0_28 = arith.constant 0 : index
    %37 = vector.load %arg10[%c0_27, %c0_28] : memref<128x128xbf16, #tpu.memory_space<vmem>>, vector<128x128xbf16>
    %cst_29 = arith.constant dense<0.000000e+00> : vector<16x128xf32>
    %38 = tpu.matmul %16, %37, %cst_29 {dimension_numbers = #tpu.dot_dimension_numbers<[1], [0], [0], [1], [0, 0, 1, 1], [], []>} : vector<16x128xbf16>, vector<128x128xbf16>, vector<16x128xf32> -> vector<16x128xf32>
    %39 = arith.addf %36, %38 : vector<16x128xf32>
    %c0_30 = arith.constant 0 : index
    %c0_31 = arith.constant 0 : index
    %40 = vector.load %arg11[%c0_30, %c0_31] : memref<128x128xbf16, #tpu.memory_space<vmem>>, vector<128x128xbf16>
    %cst_32 = arith.constant dense<0.000000e+00> : vector<16x128xf32>
    %41 = tpu.matmul %34, %40, %cst_32 {dimension_numbers = #tpu.dot_dimension_numbers<[1], [0], [0], [1], [0, 0, 1, 1], [], []>} : vector<16x128xbf16>, vector<128x128xbf16>, vector<16x128xf32> -> vector<16x128xf32>
    %42 = arith.addf %39, %41 : vector<16x128xf32>
    %c0_33 = arith.constant 0 : index
    %c0_34 = arith.constant 0 : index
    %43 = vector.load %arg12[%c0_33, %c0_34] : memref<1x128xf32, #tpu.memory_space<vmem>>, vector<1x128xf32>
    %44 = vector.broadcast %43 : vector<1x128xf32> to vector<16x128xf32>
    %45 = arith.addf %42, %44 : vector<16x128xf32>
    %c0_35 = arith.constant 0 : index
    %c0_36 = arith.constant 0 : index
    %46 = vector.load %arg13[%c0_35, %c0_36] : memref<16x128xf32, #tpu.memory_space<vmem>>, vector<16x128xf32>
    tpu.vector_store %arg13[%c0_35, %c0_36], %45 {strides = array<i32>} : memref<16x128xf32, #tpu.memory_space<vmem>>, vector<16x128xf32>,
    return
  }
  func.func @transform_0(%arg0: i32) -> (i32, i32) {
    %c0_i32 = arith.constant 0 : i32
    %c0_i32_0 = arith.constant 0 : i32
    return %arg0, %c0_i32 : i32, i32
  }
  func.func @transform_1(%arg0: i32) -> (i32, i32) {
    %c0_i32 = arith.constant 0 : i32
    %c0_i32_0 = arith.constant 0 : i32
    %c0_i32_1 = arith.constant 0 : i32
    return %c0_i32, %c0_i32_0 : i32, i32
  }
  func.func @transform_2(%arg0: i32) -> (i32, i32) {
    %c0_i32 = arith.constant 0 : i32
    %c0_i32_0 = arith.constant 0 : i32
    %c0_i32_1 = arith.constant 0 : i32
    return %c0_i32, %c0_i32_0 : i32, i32
  }
  func.func @transform_3(%arg0: i32) -> (i32, i32) {
    %c0_i32 = arith.constant 0 : i32
    %c0_i32_0 = arith.constant 0 : i32
    %c0_i32_1 = arith.constant 0 : i32
    return %c0_i32, %c0_i32_0 : i32, i32
  }
  func.func @transform_4(%arg0: i32) -> (i32, i32) {
    %c0_i32 = arith.constant 0 : i32
    %c0_i32_0 = arith.constant 0 : i32
    %c0_i32_1 = arith.constant 0 : i32
    return %c0_i32, %c0_i32_0 : i32, i32
  }
  func.func @transform_5(%arg0: i32) -> (i32, i32) {
    %c0_i32 = arith.constant 0 : i32
    %c0_i32_0 = arith.constant 0 : i32
    %c0_i32_1 = arith.constant 0 : i32
    return %c0_i32, %c0_i32_0 : i32, i32
  }
  func.func @transform_6(%arg0: i32) -> (i32, i32) {
    %c0_i32 = arith.constant 0 : i32
    %c0_i32_0 = arith.constant 0 : i32
    %c0_i32_1 = arith.constant 0 : i32
    return %c0_i32, %c0_i32_0 : i32, i32
  }
  func.func @transform_7(%arg0: i32) -> (i32, i32) {
    %c0_i32 = arith.constant 0 : i32
    %c0_i32_0 = arith.constant 0 : i32
    %c0_i32_1 = arith.constant 0 : i32
    return %c0_i32, %c0_i32_0 : i32, i32
  }
  func.func @transform_8(%arg0: i32) -> (i32, i32) {
    %c0_i32 = arith.constant 0 : i32
    %c0_i32_0 = arith.constant 0 : i32
    %c0_i32_1 = arith.constant 0 : i32
    return %c0_i32, %c0_i32_0 : i32, i32
  }
  func.func @transform_9(%arg0: i32) -> (i32, i32) {
    %c0_i32 = arith.constant 0 : i32
    %c0_i32_0 = arith.constant 0 : i32
    %c0_i32_1 = arith.constant 0 : i32
    return %c0_i32, %c0_i32_0 : i32, i32
  }
  func.func @transform_10(%arg0: i32) -> (i32, i32) {
    %c0_i32 = arith.constant 0 : i32
    %c0_i32_0 = arith.constant 0 : i32
    %c0_i32_1 = arith.constant 0 : i32
    return %c0_i32, %c0_i32_0 : i32, i32
  }
  func.func @transform_11(%arg0: i32) -> (i32, i32) {
    %c0_i32 = arith.constant 0 : i32
    %c0_i32_0 = arith.constant 0 : i32
    %c0_i32_1 = arith.constant 0 : i32
    return %c0_i32, %c0_i32_0 : i32, i32
  }
  func.func @transform_12(%arg0: i32) -> (i32, i32) {
    %c0_i32 = arith.constant 0 : i32
    %c0_i32_0 = arith.constant 0 : i32
    return %arg0, %c0_i32 : i32, i32
  }
}

</mosaic_0001>

<llo_original>
// kernel: tpu_custom_call.1
$region0: #{tpu_custom_call.1}
  #allocation0 [shape = 'u32[]', space=smem, size = 0x4, offset = 0x4, fixed_abs, tag = 'smem constant byte address 0x4 - core index']
  #allocation1 [shape = 'u32[72,128]{1,0:T(1,128)}', space=vmem, size = 0x9000, scoped, tag = 'internal scratch']
  %s0 = inlined_call_operand.hbm [shape: bf16[16,128], index: 0, kind: input, shape index: {}]
  %s1 = inlined_call_operand.hbm [shape: bf16[128,128], index: 1, kind: input, shape index: {}]
  %s2 = inlined_call_operand.vmem [shape: f32[1,128], index: 2, kind: input, shape index: {}]
  %s3 = inlined_call_operand.hbm [shape: bf16[128,128], index: 3, kind: input, shape index: {}]
  %s4 = inlined_call_operand.vmem [shape: f32[1,128], index: 4, kind: input, shape index: {}]
  %s5 = inlined_call_operand.hbm [shape: bf16[128,128], index: 5, kind: input, shape index: {}]
  %s6 = inlined_call_operand.hbm [shape: bf16[128,128], index: 6, kind: input, shape index: {}]
  %s7 = inlined_call_operand.vmem [shape: f32[1,128], index: 7, kind: input, shape index: {}]
  %s8 = inlined_call_operand.hbm [shape: bf16[128,128], index: 8, kind: input, shape index: {}]
  %s9 = inlined_call_operand.hbm [shape: bf16[128,128], index: 9, kind: input, shape index: {}]
  %s10 = inlined_call_operand.hbm [shape: bf16[128,128], index: 10, kind: input, shape index: {}]
  %s11 = inlined_call_operand.vmem [shape: f32[1,128], index: 11, kind: input, shape index: {}]
  %s12 = inlined_call_operand.hbm [shape: f32[16,128], index: 12, kind: output, shape index: {}]
  %s13 = sld [smem:[#allocation0]]
  $region90: #{tpu_custom_call.1} parent=0
    _
  %s15 = ssub.s32 1, %s13
  %s16 = scalar_select 0, %s15, %s13
  $region1: #{tpu_custom_call.1} parent=0
    #allocation2 [shape = 'u8[4096]{0}', space=vmem, size = 0x1000, scoped, tag = 'input window, operand 0, single buffered']
    #allocation3 [shape = 's32[1]{0}', space=sflag, size = 0x4, scoped, tag = 'scoped memory for tpu_custom_call.1']
    #allocation4 [shape = 's32[1]{0}', space=sflag, size = 0x4, scoped, tag = 'scoped memory for tpu_custom_call.1']
    #allocation5 [shape = 'u8[32768]{0}', space=vmem, size = 0x8000, scoped, tag = 'input window, operand 1, single buffered']
    #allocation6 [shape = 's32[1]{0}', space=sflag, size = 0x4, scoped, tag = 'scoped memory for tpu_custom_call.1']
    #allocation7 [shape = 'u8[32768]{0}', space=vmem, size = 0x8000, scoped, tag = 'input window, operand 3, single buffered']
    #allocation8 [shape = 'u8[32768]{0}', space=vmem, size = 0x8000, scoped, tag = 'input window, operand 5, single buffered']
    #allocation9 [shape = 's32[1]{0}', space=sflag, size = 0x4, scoped, tag = 'scoped memory for tpu_custom_call.1']
    #allocation10 [shape = 'u8[32768]{0}', space=vmem, size = 0x8000, scoped, tag = 'input window, operand 6, single buffered']
    #allocation11 [shape = 'u8[32768]{0}', space=vmem, size = 0x8000, scoped, tag = 'input window, operand 8, single buffered']
    #allocation12 [shape = 's32[1]{0}', space=sflag, size = 0x4, scoped, tag = 'scoped memory for tpu_custom_call.1']
    #allocation13 [shape = 'u8[32768]{0}', space=vmem, size = 0x8000, scoped, tag = 'input window, operand 9, single buffered']
    #allocation14 [shape = 'u8[32768]{0}', space=vmem, size = 0x8000, scoped, tag = 'input window, operand 10, single buffered']
    #allocation15 [shape = 's32[1]{0}', space=sflag, size = 0x4, scoped, tag = 'scoped memory for tpu_custom_call.1']
    #allocation16 [shape = 'u8[8192]{0}', space=vmem, size = 0x2000, scoped, tag = 'output window, operand 0, single buffered']
    %17 = vsyncpa [#allocation3], 0
    %18 = vsyncpa [#allocation6], 0
    %19 = vsyncpa [#allocation9], 0
    %20 = vsyncpa [#allocation12], 0
    %21 = vsyncpa [#allocation15], 0
    %22 = vsyncpa [#allocation4], 0
    // Predicated region
    $region2: #{tpu_custom_call.1} parent=1 // pred_check
      _
    $region3: #{tpu_custom_call.1} parent=1 // pred_check_branch
      %24 = sbr.rel (0) target = $region5
    $region4: #{tpu_custom_call.1} parent=1 // pred_region
      %26 = vsyncadd [#allocation3], 0
      %s27 = sshll.u32 %s0, 4
      %s28 = int_to_ptr.hbm [resolvable:$true] %s27
      %s29 = sshll.u32 [#allocation2], 4
      %s30 = int_to_ptr.vmem [resolvable:$true] %s29
      %35 = dma.hbm_to_vmem [thread:$0]  %s28, 128, %s30, [#allocation3], 64, 64, 4
    $region5: #{tpu_custom_call.1} parent=1 // pred_fallthru
      _
    // Predicated region
    $region6: #{tpu_custom_call.1} parent=1 // pred_check
      _
    $region7: #{tpu_custom_call.1} parent=1 // pred_check_branch
      %37 = sbr.rel (0) target = $region9
    $region8: #{tpu_custom_call.1} parent=1 // pred_region
      %39 = vsyncadd [#allocation6], 0
      %s40 = sshll.u32 %s1, 4
      %s41 = int_to_ptr.hbm [resolvable:$true] %s40
      %s42 = sshll.u32 [#allocation5], 4
      %s43 = int_to_ptr.vmem [resolvable:$true] %s42
      %48 = dma.hbm_to_vmem [thread:$0]  %s41, 1024, %s43, [#allocation6], 64, 64, 4
    $region9: #{tpu_custom_call.1} parent=1 // pred_fallthru
      _
    // Predicated region
    $region10: #{tpu_custom_call.1} parent=1 // pred_check
      _
    $region11: #{tpu_custom_call.1} parent=1 // pred_check_branch
      %50 = sbr.rel (0) target = $region13
    $region12: #{tpu_custom_call.1} parent=1 // pred_region
      _
    $region13: #{tpu_custom_call.1} parent=1 // pred_fallthru
      _
    // Predicated region
    $region14: #{tpu_custom_call.1} parent=1 // pred_check
      _
    $region15: #{tpu_custom_call.1} parent=1 // pred_check_branch
      %52 = sbr.rel (0) target = $region17
    $region16: #{tpu_custom_call.1} parent=1 // pred_region
      %54 = vsyncadd [#allocation6], 0
      %s55 = sshll.u32 %s3, 4
      %s56 = int_to_ptr.hbm [resolvable:$true] %s55
      %s57 = sshll.u32 [#allocation7], 4
      %s58 = int_to_ptr.vmem [resolvable:$true] %s57
      %63 = dma.hbm_to_vmem [thread:$0]  %s56, 1024, %s58, [#allocation6], 64, 64, 4
    $region17: #{tpu_custom_call.1} parent=1 // pred_fallthru
      _
    // Predicated region
    $region18: #{tpu_custom_call.1} parent=1 // pred_check
      _
    $region19: #{tpu_custom_call.1} parent=1 // pred_check_branch
      %65 = sbr.rel (0) target = $region21
    $region20: #{tpu_custom_call.1} parent=1 // pred_region
      _
    $region21: #{tpu_custom_call.1} parent=1 // pred_fallthru
      _
    // Predicated region
    $region22: #{tpu_custom_call.1} parent=1 // pred_check
      _
    $region23: #{tpu_custom_call.1} parent=1 // pred_check_branch
      %67 = sbr.rel (0) target = $region25
    $region24: #{tpu_custom_call.1} parent=1 // pred_region
      %69 = vsyncadd [#allocation9], 0
      %s70 = sshll.u32 %s5, 4
      %s71 = int_to_ptr.hbm [resolvable:$true] %s70
      %s72 = sshll.u32 [#allocation8], 4
      %s73 = int_to_ptr.vmem [resolvable:$true] %s72
      %78 = dma.hbm_to_vmem [thread:$0]  %s71, 1024, %s73, [#allocation9], 64, 64, 4
    $region25: #{tpu_custom_call.1} parent=1 // pred_fallthru
      _
    // Predicated region
    $region26: #{tpu_custom_call.1} parent=1 // pred_check
      _
    $region27: #{tpu_custom_call.1} parent=1 // pred_check_branch
      %80 = sbr.rel (0) target = $region29
    $region28: #{tpu_custom_call.1} parent=1 // pred_region
      %82 = vsyncadd [#allocation9], 0
      %s83 = sshll.u32 %s6, 4
      %s84 = int_to_ptr.hbm [resolvable:$true] %s83
      %s85 = sshll.u32 [#allocation10], 4
      %s86 = int_to_ptr.vmem [resolvable:$true] %s85
      %91 = dma.hbm_to_vmem [thread:$0]  %s84, 1024, %s86, [#allocation9], 64, 64, 4
    $region29: #{tpu_custom_call.1} parent=1 // pred_fallthru
      _
    // Predicated region
    $region30: #{tpu_custom_call.1} parent=1 // pred_check
      _
    $region31: #{tpu_custom_call.1} parent=1 // pred_check_branch
      %93 = sbr.rel (0) target = $region33
    $region32: #{tpu_custom_call.1} parent=1 // pred_region
      _
    $region33: #{tpu_custom_call.1} parent=1 // pred_fallthru
      _
    // Predicated region
    $region34: #{tpu_custom_call.1} parent=1 // pred_check
      _
    $region35: #{tpu_custom_call.1} parent=1 // pred_check_branch
      %95 = sbr.rel (0) target = $region37
    $region36: #{tpu_custom_call.1} parent=1 // pred_region
      %97 = vsyncadd [#allocation12], 0
      %s98 = sshll.u32 %s8, 4
      %s99 = int_to_ptr.hbm [resolvable:$true] %s98
      %s100 = sshll.u32 [#allocation11], 4
      %s101 = int_to_ptr.vmem [resolvable:$true] %s100
      %106 = dma.hbm_to_vmem [thread:$0]  %s99, 1024, %s101, [#allocation12], 64, 64, 4
    $region37: #{tpu_custom_call.1} parent=1 // pred_fallthru
      _
    // Predicated region
    $region38: #{tpu_custom_call.1} parent=1 // pred_check
      _
    $region39: #{tpu_custom_call.1} parent=1 // pred_check_branch
      %108 = sbr.rel (0) target = $region41
    $region40: #{tpu_custom_call.1} parent=1 // pred_region
      %110 = vsyncadd [#allocation12], 0
      %s111 = sshll.u32 %s9, 4
      %s112 = int_to_ptr.hbm [resolvable:$true] %s111
      %s113 = sshll.u32 [#allocation13], 4
      %s114 = int_to_ptr.vmem [resolvable:$true] %s113
      %119 = dma.hbm_to_vmem [thread:$0]  %s112, 1024, %s114, [#allocation12], 64, 64, 4
    $region41: #{tpu_custom_call.1} parent=1 // pred_fallthru
      _
    // Predicated region
    $region42: #{tpu_custom_call.1} parent=1 // pred_check
      _
    $region43: #{tpu_custom_call.1} parent=1 // pred_check_branch
      %121 = sbr.rel (0) target = $region45
    $region44: #{tpu_custom_call.1} parent=1 // pred_region
      %123 = vsyncadd [#allocation15], 0
      %s124 = sshll.u32 %s10, 4
      %s125 = int_to_ptr.hbm [resolvable:$true] %s124
      %s126 = sshll.u32 [#allocation14], 4
      %s127 = int_to_ptr.vmem [resolvable:$true] %s126
      %132 = dma.hbm_to_vmem [thread:$0]  %s125, 1024, %s127, [#allocation15], 64, 64, 4
    $region45: #{tpu_custom_call.1} parent=1 // pred_fallthru
      _
    // Predicated region
    $region46: #{tpu_custom_call.1} parent=1 // pred_check
      _
    $region47: #{tpu_custom_call.1} parent=1 // pred_check_branch
      %134 = sbr.rel (0) target = $region49
    $region48: #{tpu_custom_call.1} parent=1 // pred_region
      _
    $region49: #{tpu_custom_call.1} parent=1 // pred_fallthru
      _
    // Predicated region
    $region50: #{tpu_custom_call.1} parent=1 // pred_check
      _
    $region51: #{tpu_custom_call.1} parent=1 // pred_check_branch
      %136 = sbr.rel (0) target = $region53
    $region52: #{tpu_custom_call.1} parent=1 // pred_region
      %138 = dma.done [#allocation3], 128
    $region53: #{tpu_custom_call.1} parent=1 // pred_fallthru
      _
    // Predicated region
    $region54: #{tpu_custom_call.1} parent=1 // pred_check
      _
    $region55: #{tpu_custom_call.1} parent=1 // pred_check_branch
      %140 = sbr.rel (0) target = $region57
    $region56: #{tpu_custom_call.1} parent=1 // pred_region
      %142 = dma.done [#allocation6], 1024
    $region57: #{tpu_custom_call.1} parent=1 // pred_fallthru
      _
    // Predicated region
    $region58: #{tpu_custom_call.1} parent=1 // pred_check
      _
    $region59: #{tpu_custom_call.1} parent=1 // pred_check_branch
      %144 = sbr.rel (0) target = $region61
    $region60: #{tpu_custom_call.1} parent=1 // pred_region
      %146 = dma.done [#allocation6], 1024
    $region61: #{tpu_custom_call.1} parent=1 // pred_fallthru
      _
    // Predicated region
    $region62: #{tpu_custom_call.1} parent=1 // pred_check
      _
    $region63: #{tpu_custom_call.1} parent=1 // pred_check_branch
      %148 = sbr.rel (0) target = $region65
    $region64: #{tpu_custom_call.1} parent=1 // pred_region
      %150 = dma.done [#allocation9], 1024
    $region65: #{tpu_custom_call.1} parent=1 // pred_fallthru
      _
    // Predicated region
    $region66: #{tpu_custom_call.1} parent=1 // pred_check
      _
    $region67: #{tpu_custom_call.1} parent=1 // pred_check_branch
      %152 = sbr.rel (0) target = $region69
    $region68: #{tpu_custom_call.1} parent=1 // pred_region
      %154 = dma.done [#allocation9], 1024
    $region69: #{tpu_custom_call.1} parent=1 // pred_fallthru
      _
    // Predicated region
    $region70: #{tpu_custom_call.1} parent=1 // pred_check
      _
    $region71: #{tpu_custom_call.1} parent=1 // pred_check_branch
      %156 = sbr.rel (0) target = $region73
    $region72: #{tpu_custom_call.1} parent=1 // pred_region
      %158 = dma.done [#allocation12], 1024
    $region73: #{tpu_custom_call.1} parent=1 // pred_fallthru
      _
    // Predicated region
    $region74: #{tpu_custom_call.1} parent=1 // pred_check
      _
    $region75: #{tpu_custom_call.1} parent=1 // pred_check_branch
      %160 = sbr.rel (0) target = $region77
    $region76: #{tpu_custom_call.1} parent=1 // pred_region
      %162 = dma.done [#allocation12], 1024
    $region77: #{tpu_custom_call.1} parent=1 // pred_fallthru
      _
    // Predicated region
    $region78: #{tpu_custom_call.1} parent=1 // pred_check
      _
    $region79: #{tpu_custom_call.1} parent=1 // pred_check_branch
      %164 = sbr.rel (0) target = $region81
    $region80: #{tpu_custom_call.1} parent=1 // pred_region
      %166 = dma.done [#allocation15], 1024
    $region81: #{tpu_custom_call.1} parent=1 // pred_fallthru
      _
    %v167 = vld [vmem:[#allocation2] sm:$0xf]
    %v168 = vld [vmem:[#allocation2 + $0x4] sm:$0xf]
    %v169 = vld [vmem:[#allocation5] sm:$0xf]
    %v170 = vld [vmem:[#allocation5 + $0x4] sm:$0xf]
    %v171 = vld [vmem:[#allocation5 + $0x8] sm:$0xf]
    %v172 = vld [vmem:[#allocation5 + $0xc] sm:$0xf]
    %v173 = vld [vmem:[#allocation5 + $0x10] sm:$0xf]
    %v174 = vld [vmem:[#allocation5 + $0x14] sm:$0xf]
    %v175 = vld [vmem:[#allocation5 + $0x18] sm:$0xf]
    %v176 = vld [vmem:[#allocation5 + $0x1c] sm:$0xf]
    %v177 = vld [vmem:[#allocation5 + $0x20] sm:$0xf]
    %v178 = vld [vmem:[#allocation5 + $0x24] sm:$0xf]
    %v179 = vld [vmem:[#allocation5 + $0x28] sm:$0xf]
    %v180 = vld [vmem:[#allocation5 + $0x2c] sm:$0xf]
    %v181 = vld [vmem:[#allocation5 + $0x30] sm:$0xf]
    %v182 = vld [vmem:[#allocation5 + $0x34] sm:$0xf]
    %v183 = vld [vmem:[#allocation5 + $0x38] sm:$0xf]
    %v184 = vld [vmem:[#allocation5 + $0x3c] sm:$0xf]
    %v185 = vld [vmem:[%s2] sm:$0x1]
    %v187 = vperm.slane %v185, 0
    %v191 = vunpack.c.l.b16 %v167
    %v192 = vunpack.c.l.b16 %v168
    %v193 = vpack.c.b16 %v192, %v191
    %v211 = vunpack.c.l.b16 %v169
    %v212 = vunpack.c.l.b16 %v170
    %v213 = vunpack.c.l.b16 %v171
    %v214 = vunpack.c.l.b16 %v172
    %v215 = vunpack.c.l.b16 %v173
    %v216 = vunpack.c.l.b16 %v174
    %v217 = vunpack.c.l.b16 %v175
    %v218 = vunpack.c.l.b16 %v176
    %v219 = vunpack.c.l.b16 %v177
    %v220 = vunpack.c.l.b16 %v178
    %v221 = vunpack.c.l.b16 %v179
    %v222 = vunpack.c.l.b16 %v180
    %v223 = vunpack.c.l.b16 %v181
    %v224 = vunpack.c.l.b16 %v182
    %v225 = vunpack.c.l.b16 %v183
    %v226 = vunpack.c.l.b16 %v184
    %v227 = vpack.c.b16 %v212, %v211
    %v228 = vpack.c.b16 %v214, %v213
    %v229 = vpack.c.b16 %v216, %v215
    %v230 = vpack.c.b16 %v218, %v217
    %v231 = vpack.c.b16 %v220, %v219
    %v232 = vpack.c.b16 %v222, %v221
    %v233 = vpack.c.b16 %v224, %v223
    %v234 = vpack.c.b16 %v226, %v225
    %243 = vmatpush.bf16.msra.mxu0 %v234
    %244 = vmatpush.bf16.msra.mxu0 %v233
    %245 = vmatpush.bf16.msra.mxu0 %v232
    %246 = vmatpush.bf16.msra.mxu0 %v231
    %247 = vmatpush.bf16.msra.mxu0 %v230
    %248 = vmatpush.bf16.msra.mxu0 %v229
    %249 = vmatpush.bf16.msra.mxu0 %v228
    %250 = vmatpush.bf16.msra.mxu0 %v227
    %251 = vmatmul.bf16.gmra.mxu0 %v193
    %v252 = vpop.f32.mrf.mxu0
    %v253 = vadd.f32 %v187, %v252
    %v254 = vpop.f32.mrf.mxu0
    %v255 = vadd.f32 %v187, %v254
    %256 = vdwg.mxu0
    %v257 = vmax.f32 %v253, 0.0
    %v258 = vmax.f32 %v255, 0.0
    %v259 = vpack.c.bf16 %v258, %v257
    %v260 = vld [vmem:[#allocation7] sm:$0xf]
    %v261 = vld [vmem:[#allocation7 + $0x4] sm:$0xf]
    %v262 = vld [vmem:[#allocation7 + $0x8] sm:$0xf]
    %v263 = vld [vmem:[#allocation7 + $0xc] sm:$0xf]
    %v264 = vld [vmem:[#allocation7 + $0x10] sm:$0xf]
    %v265 = vld [vmem:[#allocation7 + $0x14] sm:$0xf]
    %v266 = vld [vmem:[#allocation7 + $0x18] sm:$0xf]
    %v267 = vld [vmem:[#allocation7 + $0x1c] sm:$0xf]
    %v268 = vld [vmem:[#allocation7 + $0x20] sm:$0xf]
    %v269 = vld [vmem:[#allocation7 + $0x24] sm:$0xf]
    %v270 = vld [vmem:[#allocation7 + $0x28] sm:$0xf]
    %v271 = vld [vmem:[#allocation7 + $0x2c] sm:$0xf]
    %v272 = vld [vmem:[#allocation7 + $0x30] sm:$0xf]
    %v273 = vld [vmem:[#allocation7 + $0x34] sm:$0xf]
    %v274 = vld [vmem:[#allocation7 + $0x38] sm:$0xf]
    %v275 = vld [vmem:[#allocation7 + $0x3c] sm:$0xf]
    %v276 = vld [vmem:[%s4] sm:$0x1]
    %v278 = vperm.slane %v276, 0
    %v296 = vunpack.c.l.b16 %v260
    %v297 = vunpack.c.l.b16 %v261
    %v298 = vunpack.c.l.b16 %v262
    %v299 = vunpack.c.l.b16 %v263
    %v300 = vunpack.c.l.b16 %v264
    %v301 = vunpack.c.l.b16 %v265
    %v302 = vunpack.c.l.b16 %v266
    %v303 = vunpack.c.l.b16 %v267
    %v304 = vunpack.c.l.b16 %v268
    %v305 = vunpack.c.l.b16 %v269
    %v306 = vunpack.c.l.b16 %v270
    %v307 = vunpack.c.l.b16 %v271
    %v308 = vunpack.c.l.b16 %v272
    %v309 = vunpack.c.l.b16 %v273
    %v310 = vunpack.c.l.b16 %v274
    %v311 = vunpack.c.l.b16 %v275
    %v312 = vpack.c.b16 %v297, %v296
    %v313 = vpack.c.b16 %v299, %v298
    %v314 = vpack.c.b16 %v301, %v300
    %v315 = vpack.c.b16 %v303, %v302
    %v316 = vpack.c.b16 %v305, %v304
    %v317 = vpack.c.b16 %v307, %v306
    %v318 = vpack.c.b16 %v309, %v308
    %v319 = vpack.c.b16 %v311, %v310
    %328 = vmatpush.bf16.msra.mxu0 %v319
    %329 = vmatpush.bf16.msra.mxu0 %v318
    %330 = vmatpush.bf16.msra.mxu0 %v317
    %331 = vmatpush.bf16.msra.mxu0 %v316
    %332 = vmatpush.bf16.msra.mxu0 %v315
    %333 = vmatpush.bf16.msra.mxu0 %v314
    %334 = vmatpush.bf16.msra.mxu0 %v313
    %335 = vmatpush.bf16.msra.mxu0 %v312
    %336 = vmatmul.bf16.gmra.mxu0 %v259
    %v337 = vpop.f32.mrf.mxu0
    %v338 = vadd.f32 %v278, %v337
    %v339 = vpop.f32.mrf.mxu0
    %v340 = vadd.f32 %v278, %v339
    %341 = vdwg.mxu0
    %v342 = vmax.f32 %v338, 0.0
    %v343 = vmax.f32 %v340, 0.0
    %v344 = vpack.c.bf16 %v343, %v342
    %v345 = vld [vmem:[#allocation8] sm:$0xf]
    %v346 = vld [vmem:[#allocation8 + $0x4] sm:$0xf]
    %v347 = vld [vmem:[#allocation8 + $0x8] sm:$0xf]
    %v348 = vld [vmem:[#allocation8 + $0xc] sm:$0xf]
    %v349 = vld [vmem:[#allocation8 + $0x10] sm:$0xf]
    %v350 = vld [vmem:[#allocation8 + $0x14] sm:$0xf]
    %v351 = vld [vmem:[#allocation8 + $0x18] sm:$0xf]
    %v352 = vld [vmem:[#allocation8 + $0x1c] sm:$0xf]
    %v353 = vld [vmem:[#allocation8 + $0x20] sm:$0xf]
    %v354 = vld [vmem:[#allocation8 + $0x24] sm:$0xf]
    %v355 = vld [vmem:[#allocation8 + $0x28] sm:$0xf]
    %v356 = vld [vmem:[#allocation8 + $0x2c] sm:$0xf]
    %v357 = vld [vmem:[#allocation8 + $0x30] sm:$0xf]
    %v358 = vld [vmem:[#allocation8 + $0x34] sm:$0xf]
    %v359 = vld [vmem:[#allocation8 + $0x38] sm:$0xf]
    %v360 = vld [vmem:[#allocation8 + $0x3c] sm:$0xf]
    %v361 = vld [vmem:[#allocation10] sm:$0xf]
    %v362 = vld [vmem:[#allocation10 + $0x4] sm:$0xf]
    %v363 = vld [vmem:[#allocation10 + $0x8] sm:$0xf]
    %v364 = vld [vmem:[#allocation10 + $0xc] sm:$0xf]
    %v365 = vld [vmem:[#allocation10 + $0x10] sm:$0xf]
    %v366 = vld [vmem:[#allocation10 + $0x14] sm:$0xf]
    %v367 = vld [vmem:[#allocation10 + $0x18] sm:$0xf]
    %v368 = vld [vmem:[#allocation10 + $0x1c] sm:$0xf]
    %v369 = vld [vmem:[#allocation10 + $0x20] sm:$0xf]
    %v370 = vld [vmem:[#allocation10 + $0x24] sm:$0xf]
    %v371 = vld [vmem:[#allocation10 + $0x28] sm:$0xf]
    %v372 = vld [vmem:[#allocation10 + $0x2c] sm:$0xf]
    %v373 = vld [vmem:[#allocation10 + $0x30] sm:$0xf]
    %v374 = vld [vmem:[#allocation10 + $0x34] sm:$0xf]
    %v375 = vld [vmem:[#allocation10 + $0x38] sm:$0xf]
    %v376 = vld [vmem:[#allocation10 + $0x3c] sm:$0xf]
    %v393 = vunpack.c.l.b16 %v361
    %v394 = vunpack.c.l.b16 %v362
    %v395 = vunpack.c.l.b16 %v363
    %v396 = vunpack.c.l.b16 %v364
    %v397 = vunpack.c.l.b16 %v365
    %v398 = vunpack.c.l.b16 %v366
    %v399 = vunpack.c.l.b16 %v367
    %v400 = vunpack.c.l.b16 %v368
    %v401 = vunpack.c.l.b16 %v369
    %v402 = vunpack.c.l.b16 %v370
    %v403 = vunpack.c.l.b16 %v371
    %v404 = vunpack.c.l.b16 %v372
    %v405 = vunpack.c.l.b16 %v373
    %v406 = vunpack.c.l.b16 %v374
    %v407 = vunpack.c.l.b16 %v375
    %v408 = vunpack.c.l.b16 %v376
    %v409 = vpack.c.b16 %v394, %v393
    %v410 = vpack.c.b16 %v396, %v395
    %v411 = vpack.c.b16 %v398, %v397
    %v412 = vpack.c.b16 %v400, %v399
    %v413 = vpack.c.b16 %v402, %v401
    %v414 = vpack.c.b16 %v404, %v403
    %v415 = vpack.c.b16 %v406, %v405
    %v416 = vpack.c.b16 %v408, %v407
    %425 = vmatpush.bf16.msra.mxu0 %v416
    %426 = vmatpush.bf16.msra.mxu0 %v415
    %427 = vmatpush.bf16.msra.mxu0 %v414
    %428 = vmatpush.bf16.msra.mxu0 %v413
    %429 = vmatpush.bf16.msra.mxu0 %v412
    %430 = vmatpush.bf16.msra.mxu0 %v411
    %431 = vmatpush.bf16.msra.mxu0 %v410
    %432 = vmatpush.bf16.msra.mxu0 %v409
    %433 = vmatmul.bf16.gmra.mxu0 %v344
    %v434 = vpop.f32.mrf.mxu0
    %v435 = vadd.f32 0.0, %v434
    %v436 = vpop.f32.mrf.mxu0
    %v437 = vadd.f32 0.0, %v436
    %438 = vdwg.mxu0
    %v455 = vunpack.c.l.b16 %v345
    %v456 = vunpack.c.l.b16 %v346
    %v457 = vunpack.c.l.b16 %v347
    %v458 = vunpack.c.l.b16 %v348
    %v459 = vunpack.c.l.b16 %v349
    %v460 = vunpack.c.l.b16 %v350
    %v461 = vunpack.c.l.b16 %v351
    %v462 = vunpack.c.l.b16 %v352
    %v463 = vunpack.c.l.b16 %v353
    %v464 = vunpack.c.l.b16 %v354
    %v465 = vunpack.c.l.b16 %v355
    %v466 = vunpack.c.l.b16 %v356
    %v467 = vunpack.c.l.b16 %v357
    %v468 = vunpack.c.l.b16 %v358
    %v469 = vunpack.c.l.b16 %v359
    %v470 = vunpack.c.l.b16 %v360
    %v471 = vpack.c.b16 %v456, %v455
    %v472 = vpack.c.b16 %v458, %v457
    %v473 = vpack.c.b16 %v460, %v459
    %v474 = vpack.c.b16 %v462, %v461
    %v475 = vpack.c.b16 %v464, %v463
    %v476 = vpack.c.b16 %v466, %v465
    %v477 = vpack.c.b16 %v468, %v467
    %v478 = vpack.c.b16 %v470, %v469
    %487 = vmatpush.bf16.msra.mxu0 %v478
    %488 = vmatpush.bf16.msra.mxu0 %v477
    %489 = vmatpush.bf16.msra.mxu0 %v476
    %490 = vmatpush.bf16.msra.mxu0 %v475
    %491 = vmatpush.bf16.msra.mxu0 %v474
    %492 = vmatpush.bf16.msra.mxu0 %v473
    %493 = vmatpush.bf16.msra.mxu0 %v472
    %494 = vmatpush.bf16.msra.mxu0 %v471
    %495 = vmatmul.bf16.gmra.mxu0 %v259
    %v496 = vpop.f32.mrf.mxu0
    %v497 = vadd.f32 %v435, %v496
    %v498 = vpop.f32.mrf.mxu0
    %v499 = vadd.f32 %v437, %v498
    %500 = vdwg.mxu0
    %v501 = vld [vmem:[%s7] sm:$0x1]
    %v503 = vperm.slane %v501, 0
    %v505 = vadd.f32 %v497, %v503
    %v506 = vadd.f32 %v499, %v503
    %v507 = vadd.f32 %v505, 3.0
    %v508 = vadd.f32 %v506, 3.0
    %v509 = vmax.f32 %v507, 0.0
    %v510 = vmax.f32 %v508, 0.0
    %v511 = vmin.f32 %v509, 6.0
    %v512 = vmin.f32 %v510, 6.0
    %v513 = vmul.f32 %v511, 0.16666667
    %v514 = vmul.f32 %v512, 0.16666667
    %v515 = vmul.f32 %v513, %v505
    %v516 = vmul.f32 %v514, %v506
    %v517 = vpack.c.bf16 %v516, %v515
    %v518 = vld [vmem:[#allocation11] sm:$0xf]
    %v519 = vld [vmem:[#allocation11 + $0x4] sm:$0xf]
    %v520 = vld [vmem:[#allocation11 + $0x8] sm:$0xf]
    %v521 = vld [vmem:[#allocation11 + $0xc] sm:$0xf]
    %v522 = vld [vmem:[#allocation11 + $0x10] sm:$0xf]
    %v523 = vld [vmem:[#allocation11 + $0x14] sm:$0xf]
    %v524 = vld [vmem:[#allocation11 + $0x18] sm:$0xf]
    %v525 = vld [vmem:[#allocation11 + $0x1c] sm:$0xf]
    %v526 = vld [vmem:[#allocation11 + $0x20] sm:$0xf]
    %v527 = vld [vmem:[#allocation11 + $0x24] sm:$0xf]
    %v528 = vld [vmem:[#allocation11 + $0x28] sm:$0xf]
    %v529 = vld [vmem:[#allocation11 + $0x2c] sm:$0xf]
    %v530 = vld [vmem:[#allocation11 + $0x30] sm:$0xf]
    %v531 = vld [vmem:[#allocation11 + $0x34] sm:$0xf]
    %v532 = vld [vmem:[#allocation11 + $0x38] sm:$0xf]
    %v533 = vld [vmem:[#allocation11 + $0x3c] sm:$0xf]
    %v534 = vld [vmem:[#allocation13] sm:$0xf]
    %v535 = vld [vmem:[#allocation13 + $0x4] sm:$0xf]
    %v536 = vld [vmem:[#allocation13 + $0x8] sm:$0xf]
    %v537 = vld [vmem:[#allocation13 + $0xc] sm:$0xf]
    %v538 = vld [vmem:[#allocation13 + $0x10] sm:$0xf]
    %v539 = vld [vmem:[#allocation13 + $0x14] sm:$0xf]
    %v540 = vld [vmem:[#allocation13 + $0x18] sm:$0xf]
    %v541 = vld [vmem:[#allocation13 + $0x1c] sm:$0xf]
    %v542 = vld [vmem:[#allocation13 + $0x20] sm:$0xf]
    %v543 = vld [vmem:[#allocation13 + $0x24] sm:$0xf]
    %v544 = vld [vmem:[#allocation13 + $0x28] sm:$0xf]
    %v545 = vld [vmem:[#allocation13 + $0x2c] sm:$0xf]
    %v546 = vld [vmem:[#allocation13 + $0x30] sm:$0xf]
    %v547 = vld [vmem:[#allocation13 + $0x34] sm:$0xf]
    %v548 = vld [vmem:[#allocation13 + $0x38] sm:$0xf]
    %v549 = vld [vmem:[#allocation13 + $0x3c] sm:$0xf]
    %v566 = vunpack.c.l.b16 %v534
    %v567 = vunpack.c.l.b16 %v535
    %v568 = vunpack.c.l.b16 %v536
    %v569 = vunpack.c.l.b16 %v537
    %v570 = vunpack.c.l.b16 %v538
    %v571 = vunpack.c.l.b16 %v539
    %v572 = vunpack.c.l.b16 %v540
    %v573 = vunpack.c.l.b16 %v541
    %v574 = vunpack.c.l.b16 %v542
    %v575 = vunpack.c.l.b16 %v543
    %v576 = vunpack.c.l.b16 %v544
    %v577 = vunpack.c.l.b16 %v545
    %v578 = vunpack.c.l.b16 %v546
    %v579 = vunpack.c.l.b16 %v547
    %v580 = vunpack.c.l.b16 %v548
    %v581 = vunpack.c.l.b16 %v549
    %v582 = vpack.c.b16 %v567, %v566
    %v583 = vpack.c.b16 %v569, %v568
    %v584 = vpack.c.b16 %v571, %v570
    %v585 = vpack.c.b16 %v573, %v572
    %v586 = vpack.c.b16 %v575, %v574
    %v587 = vpack.c.b16 %v577, %v576
    %v588 = vpack.c.b16 %v579, %v578
    %v589 = vpack.c.b16 %v581, %v580
    %598 = vmatpush.bf16.msra.mxu0 %v589
    %599 = vmatpush.bf16.msra.mxu0 %v588
    %600 = vmatpush.bf16.msra.mxu0 %v587
    %601 = vmatpush.bf16.msra.mxu0 %v586
    %602 = vmatpush.bf16.msra.mxu0 %v585
    %603 = vmatpush.bf16.msra.mxu0 %v584
    %604 = vmatpush.bf16.msra.mxu0 %v583
    %605 = vmatpush.bf16.msra.mxu0 %v582
    %606 = vmatmul.bf16.gmra.mxu0 %v344
    %v607 = vpop.f32.mrf.mxu0
    %v608 = vadd.f32 0.0, %v607
    %v609 = vpop.f32.mrf.mxu0
    %v610 = vadd.f32 0.0, %v609
    %611 = vdwg.mxu0
    %v628 = vunpack.c.l.b16 %v518
    %v629 = vunpack.c.l.b16 %v519
    %v630 = vunpack.c.l.b16 %v520
    %v631 = vunpack.c.l.b16 %v521
    %v632 = vunpack.c.l.b16 %v522
    %v633 = vunpack.c.l.b16 %v523
    %v634 = vunpack.c.l.b16 %v524
    %v635 = vunpack.c.l.b16 %v525
    %v636 = vunpack.c.l.b16 %v526
    %v637 = vunpack.c.l.b16 %v527
    %v638 = vunpack.c.l.b16 %v528
    %v639 = vunpack.c.l.b16 %v529
    %v640 = vunpack.c.l.b16 %v530
    %v641 = vunpack.c.l.b16 %v531
    %v642 = vunpack.c.l.b16 %v532
    %v643 = vunpack.c.l.b16 %v533
    %v644 = vpack.c.b16 %v629, %v628
    %v645 = vpack.c.b16 %v631, %v630
    %v646 = vpack.c.b16 %v633, %v632
    %v647 = vpack.c.b16 %v635, %v634
    %v648 = vpack.c.b16 %v637, %v636
    %v649 = vpack.c.b16 %v639, %v638
    %v650 = vpack.c.b16 %v641, %v640
    %v651 = vpack.c.b16 %v643, %v642
    %660 = vmatpush.bf16.msra.mxu0 %v651
    %661 = vmatpush.bf16.msra.mxu0 %v650
    %662 = vmatpush.bf16.msra.mxu0 %v649
    %663 = vmatpush.bf16.msra.mxu0 %v648
    %664 = vmatpush.bf16.msra.mxu0 %v647
    %665 = vmatpush.bf16.msra.mxu0 %v646
    %666 = vmatpush.bf16.msra.mxu0 %v645
    %667 = vmatpush.bf16.msra.mxu0 %v644
    %668 = vmatmul.bf16.gmra.mxu0 %v259
    %v669 = vpop.f32.mrf.mxu0
    %v670 = vadd.f32 %v608, %v669
    %v671 = vpop.f32.mrf.mxu0
    %v672 = vadd.f32 %v610, %v671
    %673 = vdwg.mxu0
    %v674 = vld [vmem:[#allocation14] sm:$0xf]
    %v675 = vld [vmem:[#allocation14 + $0x4] sm:$0xf]
    %v676 = vld [vmem:[#allocation14 + $0x8] sm:$0xf]
    %v677 = vld [vmem:[#allocation14 + $0xc] sm:$0xf]
    %v678 = vld [vmem:[#allocation14 + $0x10] sm:$0xf]
    %v679 = vld [vmem:[#allocation14 + $0x14] sm:$0xf]
    %v680 = vld [vmem:[#allocation14 + $0x18] sm:$0xf]
    %v681 = vld [vmem:[#allocation14 + $0x1c] sm:$0xf]
    %v682 = vld [vmem:[#allocation14 + $0x20] sm:$0xf]
    %v683 = vld [vmem:[#allocation14 + $0x24] sm:$0xf]
    %v684 = vld [vmem:[#allocation14 + $0x28] sm:$0xf]
    %v685 = vld [vmem:[#allocation14 + $0x2c] sm:$0xf]
    %v686 = vld [vmem:[#allocation14 + $0x30] sm:$0xf]
    %v687 = vld [vmem:[#allocation14 + $0x34] sm:$0xf]
    %v688 = vld [vmem:[#allocation14 + $0x38] sm:$0xf]
    %v689 = vld [vmem:[#allocation14 + $0x3c] sm:$0xf]
    %v706 = vunpack.c.l.b16 %v674
    %v707 = vunpack.c.l.b16 %v675
    %v708 = vunpack.c.l.b16 %v676
    %v709 = vunpack.c.l.b16 %v677
    %v710 = vunpack.c.l.b16 %v678
    %v711 = vunpack.c.l.b16 %v679
    %v712 = vunpack.c.l.b16 %v680
    %v713 = vunpack.c.l.b16 %v681
    %v714 = vunpack.c.l.b16 %v682
    %v715 = vunpack.c.l.b16 %v683
    %v716 = vunpack.c.l.b16 %v684
    %v717 = vunpack.c.l.b16 %v685
    %v718 = vunpack.c.l.b16 %v686
    %v719 = vunpack.c.l.b16 %v687
    %v720 = vunpack.c.l.b16 %v688
    %v721 = vunpack.c.l.b16 %v689
    %v722 = vpack.c.b16 %v707, %v706
    %v723 = vpack.c.b16 %v709, %v708
    %v724 = vpack.c.b16 %v711, %v710
    %v725 = vpack.c.b16 %v713, %v712
    %v726 = vpack.c.b16 %v715, %v714
    %v727 = vpack.c.b16 %v717, %v716
    %v728 = vpack.c.b16 %v719, %v718
    %v729 = vpack.c.b16 %v721, %v720
    %738 = vmatpush.bf16.msra.mxu0 %v729
    %739 = vmatpush.bf16.msra.mxu0 %v728
    %740 = vmatpush.bf16.msra.mxu0 %v727
    %741 = vmatpush.bf16.msra.mxu0 %v726
    %742 = vmatpush.bf16.msra.mxu0 %v725
    %743 = vmatpush.bf16.msra.mxu0 %v724
    %744 = vmatpush.bf16.msra.mxu0 %v723
    %745 = vmatpush.bf16.msra.mxu0 %v722
    %746 = vmatmul.bf16.gmra.mxu0 %v517
    %v747 = vpop.f32.mrf.mxu0
    %v748 = vadd.f32 0.0, %v747
    %v749 = vpop.f32.mrf.mxu0
    %v750 = vadd.f32 0.0, %v749
    %751 = vdwg.mxu0
    %v752 = vadd.f32 %v670, %v748
    %v753 = vadd.f32 %v672, %v750
    %v754 = vld [vmem:[%s11] sm:$0x1]
    %v756 = vperm.slane %v754, 0
    %v758 = vadd.f32 %v752, %v756
    %v759 = vadd.f32 %v753, %v756
    %760 = vst [vmem:[#allocation16] sm:$0xff] %v758
    %761 = vst [vmem:[#allocation16 + $0x8] sm:$0xff] %v759
    // Predicated region
    $region82: #{tpu_custom_call.1} parent=1 // pred_check
      _
    $region83: #{tpu_custom_call.1} parent=1 // pred_check_branch
      %763 = sbr.rel (0) target = $region85
    $region84: #{tpu_custom_call.1} parent=1 // pred_region
      %765 = vsyncadd [#allocation4], 0
      %s766 = sshll.u32 [#allocation16], 4
      %s767 = int_to_ptr.vmem [resolvable:$true] %s766
      %s768 = sshll.u32 %s12, 4
      %s769 = int_to_ptr.hbm [resolvable:$true] %s768
      %774 = dma.vmem_to_hbm [thread:$0]  %s767, 256, %s769, [#allocation4], 128, 128, 8
    $region85: #{tpu_custom_call.1} parent=1 // pred_fallthru
      _
    // Predicated region
    $region86: #{tpu_custom_call.1} parent=1 // pred_check
      _
    $region87: #{tpu_custom_call.1} parent=1 // pred_check_branch
      %776 = sbr.rel (0) target = $region89
    $region88: #{tpu_custom_call.1} parent=1 // pred_region
      %778 = dma.done [#allocation4], 256
    $region89: #{tpu_custom_call.1} parent=1 // pred_fallthru
      _
    %779 = vsyncpa [#allocation3], 1
    %780 = vsyncpa [#allocation6], 1
    %781 = vsyncpa [#allocation9], 1
    %782 = vsyncpa [#allocation12], 1
    %783 = vsyncpa [#allocation15], 1
    %784 = vsyncpa [#allocation4], 1

</llo_original>
